<compile_context>
chip_gen: v7x
topology: tpu7x:2x2x1
jax: 0.10.0
libtpu: 0.0.40
codegen_flags: <defaults>
</compile_context>

<pallas_src>
import functools

import jax
import jax.numpy as jnp
from jax.experimental import pallas as pl
from jax.experimental.pallas import tpu as pltpu

EPS = 1e-5
NEG_SLOPE = 0.2


def quantile_embedding_kernel(q_ref, pe_ref, w2_ref, ps_ref, out_ref, *, use_bf16):
    B = q_ref.shape[0]
    inv_b = 1.0 / B                                   # static python float

    q = q_ref[...]                                    # (B, 1) f32
    pe = pe_ref[...]                                  # (4, E): colsum(W1), b1, g1, beta1
    ps = ps_ref[...]                                  # (2, S): g2, beta2
    w1s, b1, g1, beta1 = pe[0:1], pe[1:2], pe[2:3], pe[3:4]
    g2, beta2 = ps[0:1], ps[1:2]

    # ---- hidden: rank-1 Linear -> LeakyReLU(0.2) -> BatchNorm1d (batch stats) ----
    # repeat(q, E) @ W1 + b1  ==  q * colsum(W1) + b1   (exact; no MXU needed)
    h = q * w1s + b1                                  # (B, E)
    h = jnp.where(h > 0, h, NEG_SLOPE * h)

    mu1 = jnp.sum(h, axis=0, keepdims=True) * inv_b            # (1, E)
    ms1 = jnp.sum(h * h, axis=0, keepdims=True) * inv_b        # (1, E)
    var1 = jnp.maximum(ms1 - mu1 * mu1, 0.0)
    scale1 = jax.lax.rsqrt(var1 + EPS) * g1
    shift1 = beta1 - mu1 * scale1
    h = h * scale1 + shift1

    # ---- to_state: Linear (b2 cancels in the following BN) -> BatchNorm1d ----
    if use_bf16:
        y = jnp.dot(h.astype(jnp.bfloat16), w2_ref[...],
                    preferred_element_type=jnp.float32)
    else:
        y = jnp.dot(h, w2_ref[...], preferred_element_type=jnp.float32)

    mu2 = jnp.sum(y, axis=0, keepdims=True) * inv_b            # (1, S)
    ms2 = jnp.sum(y * y, axis=0, keepdims=True) * inv_b        # (1, S)
    var2 = jnp.maximum(ms2 - mu2 * mu2, 0.0)
    scale2 = jax.lax.rsqrt(var2 + EPS) * g2
    shift2 = beta2 - mu2 * scale2

    out_ref[...] = (y * scale2 + shift2).astype(out_ref.dtype)


def pack_params(params, *, use_bf16_matmul=False):
    """One-time repack: fold W1 into its column sum (rank-1 first layer), pack the
    per-feature vectors into two contiguous arrays, drop b2 (cancels in BN)."""
    w1_colsum = jnp.sum(params["w1"], axis=0, keepdims=True)            # (1, E)
    packed_e = jnp.concatenate(
        [w1_colsum, params["b1"], params["g1"], params["beta1"]], axis=0)   # (4, E)
    packed_s = jnp.concatenate([params["g2"], params["beta2"]], axis=0)     # (2, S)
    w2 = params["w2"]
    if use_bf16_matmul:
        w2 = w2.astype(jnp.bfloat16)
    return {"packed_e": packed_e, "w2": w2, "packed_s": packed_s,
            "use_bf16_matmul": use_bf16_matmul}


def quantile_embedding(quantiles, packed):
    """quantiles: (B, 1) f32. packed: output of pack_params().

    Whole problem runs as a single block (no grid): BN is over the batch dim, so
    full-batch residency avoids any cross-tile stats pass. Even the full IQN batch
    (B ~ 8K rows, E=64 f32 ~ 2 MB) fits comfortably in VMEM on v5e/v6e/v7x.
    """
    B = quantiles.shape[0]
    S = packed["packed_s"].shape[1]
    vmem = pl.BlockSpec(memory_space=pltpu.MemorySpace.VMEM)
    kernel = functools.partial(quantile_embedding_kernel,
                               use_bf16=packed["use_bf16_matmul"])
    return pl.pallas_call(
        kernel,
        out_shape=jax.ShapeDtypeStruct((B, S), jnp.float32),
        in_specs=[vmem] * 4,
        out_specs=vmem,
    )(quantiles, packed["packed_e"], packed["w2"], packed["packed_s"])


def init_params(key, state_dims, embedding_dims=64):
    """Deterministic synthetic init (PyTorch-style uniform ±1/sqrt(fan_in) for Linear,
    gamma=1 / beta=0 for BatchNorm). Weights stored as (in, out)."""
    k1, k2, k3, k4 = jax.random.split(key, 4)
    E, S = embedding_dims, state_dims
    lim1 = 1.0 / jnp.sqrt(E)
    lim2 = 1.0 / jnp.sqrt(E)
    return {
        "w1": jax.random.uniform(k1, (E, E), jnp.float32, -lim1, lim1),
        "b1": jax.random.uniform(k2, (1, E), jnp.float32, -lim1, lim1),
        "g1": jnp.ones((1, E), jnp.float32),
        "beta1": jnp.zeros((1, E), jnp.float32),
        "w2": jax.random.uniform(k3, (E, S), jnp.float32, -lim2, lim2),
        "b2": jax.random.uniform(k4, (1, S), jnp.float32, -lim2, lim2),
        "g2": jnp.ones((1, S), jnp.float32),
        "beta2": jnp.zeros((1, S), jnp.float32),
    }


def _reference(quantiles, p):
    """Pure-JAX reference of the original module (keeps b2 and the two-pass BN)."""
    E = p["w1"].shape[0]
    x = jnp.broadcast_to(quantiles, (quantiles.shape[0], E))
    h = x @ p["w1"] + p["b1"]
    h = jnp.where(h > 0, h, NEG_SLOPE * h)
    mu = h.mean(0, keepdims=True)
    var = ((h - mu) ** 2).mean(0, keepdims=True)
    h = (h - mu) / jnp.sqrt(var + EPS) * p["g1"] + p["beta1"]
    y = h @ p["w2"] + p["b2"]
    mu = y.mean(0, keepdims=True)
    var = ((y - mu) ** 2).mean(0, keepdims=True)
    return (y - mu) / jnp.sqrt(var + EPS) * p["g2"] + p["beta2"]


if __name__ == "__main__":
    B = 8              # batch of quantile samples (small demo; kernel handles full IQN batches too)
    EMBEDDING_DIMS = 64
    STATE_DIMS = 32

    key = jax.random.PRNGKey(0)
    kq, kp = jax.random.split(key)
    quantiles = jax.random.uniform(kq, (B, 1), jnp.float32)   # quantiles in [0, 1)
    params = init_params(kp, STATE_DIMS, EMBEDDING_DIMS)
    packed = pack_params(params, use_bf16_matmul=False)       # keep f32 at small B / v5e

    out = quantile_embedding(quantiles, packed)
    out = jax.block_until_ready(out)

    ref = _reference(quantiles, params)
    assert out.shape == (B, STATE_DIMS)
    assert jnp.allclose(out, ref, atol=1e-4, rtol=1e-4), "mismatch vs pure-JAX reference"

    print("KERNEL_OK")
</pallas_src>

<mosaic_0001>
module attributes {stable_mosaic.version = 11 : i64} {
  func.func @quantile_embedding_kernel(%arg0: memref<8x1xf32, #tpu.memory_space<vmem>>, %arg1: memref<4x64xf32, #tpu.memory_space<vmem>>, %arg2: memref<64x32xf32, #tpu.memory_space<vmem>>, %arg3: memref<2x32xf32, #tpu.memory_space<vmem>>, %arg4: memref<8x32xf32, #tpu.memory_space<vmem>>) attributes {dimension_semantics = [], scalar_prefetch = 0 : i64, scratch_operands = 0 : i64, tpu.core_type = #tpu.core_type<tc>} {
    %c0 = arith.constant 0 : index
    %c0_0 = arith.constant 0 : index
    %0 = vector.load %arg0[%c0, %c0_0] : memref<8x1xf32, #tpu.memory_space<vmem>>, vector<8x1xf32>
    %c0_1 = arith.constant 0 : index
    %c0_2 = arith.constant 0 : index
    %1 = vector.load %arg1[%c0_1, %c0_2] : memref<4x64xf32, #tpu.memory_space<vmem>>, vector<4x64xf32>
    %c0_3 = arith.constant 0 : index
    %c0_4 = arith.constant 0 : index
    %2 = vector.load %arg3[%c0_3, %c0_4] : memref<2x32xf32, #tpu.memory_space<vmem>>, vector<2x32xf32>
    %3 = vector.extract_strided_slice %1 {offsets = [0, 0], sizes = [1, 64], strides = [1, 1]} : vector<4x64xf32> to vector<1x64xf32>
    %4 = vector.extract_strided_slice %1 {offsets = [1, 0], sizes = [1, 64], strides = [1, 1]} : vector<4x64xf32> to vector<1x64xf32>
    %5 = vector.extract_strided_slice %1 {offsets = [2, 0], sizes = [1, 64], strides = [1, 1]} : vector<4x64xf32> to vector<1x64xf32>
    %6 = vector.extract_strided_slice %1 {offsets = [3, 0], sizes = [1, 64], strides = [1, 1]} : vector<4x64xf32> to vector<1x64xf32>
    %7 = vector.extract_strided_slice %2 {offsets = [0, 0], sizes = [1, 32], strides = [1, 1]} : vector<2x32xf32> to vector<1x32xf32>
    %8 = vector.extract_strided_slice %2 {offsets = [1, 0], sizes = [1, 32], strides = [1, 1]} : vector<2x32xf32> to vector<1x32xf32>
    %9 = vector.broadcast %0 : vector<8x1xf32> to vector<8x64xf32>
    %10 = vector.broadcast %3 : vector<1x64xf32> to vector<8x64xf32>
    %11 = arith.mulf %9, %10 : vector<8x64xf32>
    %12 = vector.broadcast %4 : vector<1x64xf32> to vector<8x64xf32>
    %13 = arith.addf %11, %12 : vector<8x64xf32>
    %cst = arith.constant 0.000000e+00 : f32
    %14 = vector.broadcast %cst : f32 to vector<8x64xf32>
    %15 = arith.cmpf ogt, %13, %14 : vector<8x64xf32>
    %cst_5 = arith.constant 2.000000e-01 : f32
    %16 = vector.broadcast %cst_5 : f32 to vector<8x64xf32>
    %17 = arith.mulf %16, %13 : vector<8x64xf32>
    %18 = arith.select %15, %13, %17 : vector<8x64xi1>, vector<8x64xf32>
    %cst_6 = arith.constant dense<0.000000e+00> : vector<64xf32>
    %19 = vector.multi_reduction <add>, %18, %cst_6 [0] : vector<8x64xf32> to vector<64xf32>
    %20 = vector.shape_cast %19 : vector<64xf32> to vector<1x64xf32>
    %cst_7 = arith.constant 1.250000e-01 : f32
    %21 = vector.broadcast %cst_7 : f32 to vector<1x64xf32>
    %22 = arith.mulf %20, %21 : vector<1x64xf32>
    %23 = arith.mulf %18, %18 : vector<8x64xf32>
    %cst_8 = arith.constant dense<0.000000e+00> : vector<64xf32>
    %24 = vector.multi_reduction <add>, %23, %cst_8 [0] : vector<8x64xf32> to vector<64xf32>
    %25 = vector.shape_cast %24 : vector<64xf32> to vector<1x64xf32>
    %cst_9 = arith.constant 1.250000e-01 : f32
    %26 = vector.broadcast %cst_9 : f32 to vector<1x64xf32>
    %27 = arith.mulf %25, %26 : vector<1x64xf32>
    %28 = arith.mulf %22, %22 : vector<1x64xf32>
    %29 = arith.subf %27, %28 : vector<1x64xf32>
    %cst_10 = arith.constant 0.000000e+00 : f32
    %30 = vector.broadcast %cst_10 : f32 to vector<1x64xf32>
    %31 = arith.maximumf %29, %30 : vector<1x64xf32>
    %cst_11 = arith.constant 9.99999974E-6 : f32
    %32 = vector.broadcast %cst_11 : f32 to vector<1x64xf32>
    %33 = arith.addf %31, %32 : vector<1x64xf32>
    %34 = math.rsqrt %33 : vector<1x64xf32>
    %35 = arith.mulf %34, %5 : vector<1x64xf32>
    %36 = arith.mulf %22, %35 : vector<1x64xf32>
    %37 = arith.subf %6, %36 : vector<1x64xf32>
    %38 = vector.broadcast %35 : vector<1x64xf32> to vector<8x64xf32>
    %39 = arith.mulf %18, %38 : vector<8x64xf32>
    %40 = vector.broadcast %37 : vector<1x64xf32> to vector<8x64xf32>
    %41 = arith.addf %39, %40 : vector<8x64xf32>
    %c0_12 = arith.constant 0 : index
    %c0_13 = arith.constant 0 : index
    %42 = vector.load %arg2[%c0_12, %c0_13] : memref<64x32xf32, #tpu.memory_space<vmem>>, vector<64x32xf32>
    %cst_14 = arith.constant dense<0.000000e+00> : vector<8x32xf32>
    %43 = tpu.matmul %41, %42, %cst_14 {dimension_numbers = #tpu.dot_dimension_numbers<[1], [0], [0], [1], [0, 0, 1, 1], [], []>} : vector<8x64xf32>, vector<64x32xf32>, vector<8x32xf32> -> vector<8x32xf32>
    %cst_15 = arith.constant dense<0.000000e+00> : vector<32xf32>
    %44 = vector.multi_reduction <add>, %43, %cst_15 [0] : vector<8x32xf32> to vector<32xf32>
    %45 = vector.shape_cast %44 : vector<32xf32> to vector<1x32xf32>
    %cst_16 = arith.constant 1.250000e-01 : f32
    %46 = vector.broadcast %cst_16 : f32 to vector<1x32xf32>
    %47 = arith.mulf %45, %46 : vector<1x32xf32>
    %48 = arith.mulf %43, %43 : vector<8x32xf32>
    %cst_17 = arith.constant dense<0.000000e+00> : vector<32xf32>
    %49 = vector.multi_reduction <add>, %48, %cst_17 [0] : vector<8x32xf32> to vector<32xf32>
    %50 = vector.shape_cast %49 : vector<32xf32> to vector<1x32xf32>
    %cst_18 = arith.constant 1.250000e-01 : f32
    %51 = vector.broadcast %cst_18 : f32 to vector<1x32xf32>
    %52 = arith.mulf %50, %51 : vector<1x32xf32>
    %53 = arith.mulf %47, %47 : vector<1x32xf32>
    %54 = arith.subf %52, %53 : vector<1x32xf32>
    %cst_19 = arith.constant 0.000000e+00 : f32
    %55 = vector.broadcast %cst_19 : f32 to vector<1x32xf32>
    %56 = arith.maximumf %54, %55 : vector<1x32xf32>
    %cst_20 = arith.constant 9.99999974E-6 : f32
    %57 = vector.broadcast %cst_20 : f32 to vector<1x32xf32>
    %58 = arith.addf %56, %57 : vector<1x32xf32>
    %59 = math.rsqrt %58 : vector<1x32xf32>
    %60 = arith.mulf %59, %7 : vector<1x32xf32>
    %61 = arith.mulf %47, %60 : vector<1x32xf32>
    %62 = arith.subf %8, %61 : vector<1x32xf32>
    %63 = vector.broadcast %60 : vector<1x32xf32> to vector<8x32xf32>
    %64 = arith.mulf %43, %63 : vector<8x32xf32>
    %65 = vector.broadcast %62 : vector<1x32xf32> to vector<8x32xf32>
    %66 = arith.addf %64, %65 : vector<8x32xf32>
    %c0_21 = arith.constant 0 : index
    %c0_22 = arith.constant 0 : index
    %67 = vector.load %arg4[%c0_21, %c0_22] : memref<8x32xf32, #tpu.memory_space<vmem>>, vector<8x32xf32>
    tpu.vector_store %arg4[%c0_21, %c0_22], %66 {strides = array<i32>} : memref<8x32xf32, #tpu.memory_space<vmem>>, vector<8x32xf32>,
    return
  }
}

</mosaic_0001>

<llo_original>
// kernel: tpu_custom_call.1
$region0: #{tpu_custom_call.1}
  #allocation0 [shape = 'u32[]', space=smem, size = 0x4, offset = 0x4, fixed_abs, tag = 'smem constant byte address 0x4 - core index']
  #allocation1 [shape = 'u32[144,128]{1,0:T(1,128)}', space=vmem, size = 0x12000, scoped, tag = 'internal scratch']
  %s0 = inlined_call_operand.vmem [shape: f32[8,1], index: 0, kind: input, shape index: {}]
  %s1 = inlined_call_operand.vmem [shape: f32[4,64], index: 1, kind: input, shape index: {}]
  %s2 = inlined_call_operand.vmem [shape: f32[64,32], index: 2, kind: input, shape index: {}]
  %s3 = inlined_call_operand.vmem [shape: f32[2,32], index: 3, kind: input, shape index: {}]
  %s4 = inlined_call_operand.hbm [shape: f32[8,32], index: 4, kind: output, shape index: {}]
  %s5 = sld [smem:[#allocation0]]
  $region26: #{tpu_custom_call.1} parent=0
    _
  %s7 = ssub.s32 1, %s5
  %s8 = scalar_select 0, %s7, %s5
  $region1: #{tpu_custom_call.1} parent=0
    #allocation2 [shape = 'u8[4096]{0}', space=vmem, size = 0x1000, scoped, tag = 'output window, operand 0, single buffered']
    #allocation3 [shape = 's32[1]{0}', space=sflag, size = 0x4, scoped, tag = 'scoped memory for tpu_custom_call.1']
    %9 = vsyncpa [#allocation3], 0
    // Predicated region
    $region2: #{tpu_custom_call.1} parent=1 // pred_check
      _
    $region3: #{tpu_custom_call.1} parent=1 // pred_check_branch
      %11 = sbr.rel (0) target = $region5
    $region4: #{tpu_custom_call.1} parent=1 // pred_region
      _
    $region5: #{tpu_custom_call.1} parent=1 // pred_fallthru
      _
    // Predicated region
    $region6: #{tpu_custom_call.1} parent=1 // pred_check
      _
    $region7: #{tpu_custom_call.1} parent=1 // pred_check_branch
      %13 = sbr.rel (0) target = $region9
    $region8: #{tpu_custom_call.1} parent=1 // pred_region
      _
    $region9: #{tpu_custom_call.1} parent=1 // pred_fallthru
      _
    // Predicated region
    $region10: #{tpu_custom_call.1} parent=1 // pred_check
      _
    $region11: #{tpu_custom_call.1} parent=1 // pred_check_branch
      %15 = sbr.rel (0) target = $region13
    $region12: #{tpu_custom_call.1} parent=1 // pred_region
      _
    $region13: #{tpu_custom_call.1} parent=1 // pred_fallthru
      _
    // Predicated region
    $region14: #{tpu_custom_call.1} parent=1 // pred_check
      _
    $region15: #{tpu_custom_call.1} parent=1 // pred_check_branch
      %17 = sbr.rel (0) target = $region17
    $region16: #{tpu_custom_call.1} parent=1 // pred_region
      _
    $region17: #{tpu_custom_call.1} parent=1 // pred_fallthru
      _
    %v18 = vld [vmem:[%s0] sm:$0xff]
    %v19 = vld [vmem:[%s1] sm:$0xf]
    %v20 = vld [vmem:[%s3] sm:$0x3]
    %22 = vset.pattern.permute.xlu0 0
    %23 = vperm.xlu0 %22, %v18
    %v24 = vpop.permute.xlu0 %23
    %v26 = vlaneseq
    %v27 = vshrl.u32 %v26, 7
    %v28 = vsub.s32 0, %v27
    %v29 = vrot.slane %v19, %v28
    %v30 = vmul.f32 %v24, %v29
    %v31 = vlaneseq
    %v32 = vshrl.u32 %v31, 7
    %v33 = vsub.s32 1, %v32
    %v34 = vrot.slane %v19, %v33
    %v35 = vadd.f32 %v30, %v34
    %vm36 = vcmp.gt.f32.partialorder %v35, 0.0
    %v37 = vmul.f32 %v35, 0.2
    %v38 = vsel %vm36, %v35, %v37
    %vm39 = vcmask 523264
    %v40 = vsel %vm39, %v38, 0.0
    %v41 = vrot.slane %v40, 4
    %v42 = vadd.f32 %v40, %v41
    %v43 = vrot.slane %v42, 2
    %v44 = vadd.f32 %v42, %v43
    %v45 = vrot.slane %v44, 1
    %v46 = vadd.f32 %v44, %v45
    %v47 = vmul.f32 %v46, 0.125
    %v48 = vmul.f32 %v38, %v38
    %v49 = vsel %vm39, %v48, 0.0
    %v50 = vrot.slane %v49, 4
    %v51 = vadd.f32 %v49, %v50
    %v52 = vrot.slane %v51, 2
    %v53 = vadd.f32 %v51, %v52
    %v54 = vrot.slane %v53, 1
    %v55 = vadd.f32 %v53, %v54
    %v56 = vmul.f32 %v55, 0.125
    %v57 = vmul.f32 %v47, %v47
    %v58 = vsub.f32 %v56, %v57
    %v59 = vmax.f32 %v58, 0.0
    %v60 = vadd.f32 %v59, 1e-05
    %v61 = vrsqrt.pop %v60
    %v62 = vmul.f32 %v61, %v19
    %v63 = vmul.f32 %v47, %v62
    %v65 = vrot.slane %v63, 7
    %v67 = vsub.f32 %v19, %v65
    %v68 = vlaneseq
    %v69 = vshrl.u32 %v68, 7
    %v70 = vsub.s32 2, %v69
    %v71 = vrot.slane %v62, %v70
    %v72 = vmul.f32 %v38, %v71
    %v73 = vlaneseq
    %v74 = vshrl.u32 %v73, 7
    %v75 = vsub.s32 3, %v74
    %v76 = vrot.slane %v67, %v75
    %v77 = vadd.f32 %v72, %v76
    %v78 = vld [vmem:[%s2] sm:$0xff]
    %v79 = vld [vmem:[%s2 + $0x8] sm:$0xff]
    %v80 = vld [vmem:[%s2 + $0x10] sm:$0xff]
    %v81 = vld [vmem:[%s2 + $0x18] sm:$0xff]
    %v82 = vld [vmem:[%s2 + $0x20] sm:$0xff]
    %v83 = vld [vmem:[%s2 + $0x28] sm:$0xff]
    %v84 = vld [vmem:[%s2 + $0x30] sm:$0xff]
    %v85 = vld [vmem:[%s2 + $0x38] sm:$0xff]
    %v87 = vsel %vm39, %v77, 0
    %89 = vmatprep.subr.mxu0 0.0
    %90 = vmatpush1.msra.mxu0 %v78
    %91 = vmatprep.subr.mxu0 0.0
    %92 = vmatpush1.msra.mxu0 %v79
    %93 = vmatprep.subr.mxu0 0.0
    %94 = vmatpush1.msra.mxu0 %v80
    %95 = vmatprep.subr.mxu0 0.0
    %96 = vmatpush1.msra.mxu0 %v81
    %97 = vmatprep.subr.mxu0 0.0
    %98 = vmatpush1.msra.mxu0 %v82
    %99 = vmatprep.subr.mxu0 0.0
    %100 = vmatpush1.msra.mxu0 %v83
    %101 = vmatprep.subr.mxu0 0.0
    %102 = vmatpush1.msra.mxu0 %v84
    %103 = vmatprep.subr.mxu0 0.0
    %104 = vmatpush1.msra.mxu0 %v85
    %105 = vmatprep.subr.mxu0 0.0
    %106 = vmatpush1.msra.mxu0 0.0
    %107 = vmatprep.subr.mxu0 0.0
    %108 = vmatpush1.msra.mxu0 0.0
    %109 = vmatprep.subr.mxu0 0.0
    %110 = vmatpush1.msra.mxu0 0.0
    %111 = vmatprep.subr.mxu0 0.0
    %112 = vmatpush1.msra.mxu0 0.0
    %113 = vmatprep.subr.mxu0 0.0
    %114 = vmatpush1.msra.mxu0 0.0
    %115 = vmatprep.subr.mxu0 0.0
    %116 = vmatpush1.msra.mxu0 0.0
    %117 = vmatprep.subr.mxu0 0.0
    %118 = vmatpush1.msra.mxu0 0.0
    %119 = vmatprep.subr.mxu0 0.0
    %120 = vmatpush1.msra.mxu0 0.0
    %121 = vmatprep.subr.mxu0 0.0
    %122 = vmatpush1.msra.mxu0 0.0
    %123 = vmatprep.subr.mxu0 0.0
    %124 = vmatpush1.msra.mxu0 0.0
    %125 = vmatprep.subr.mxu0 0.0
    %126 = vmatpush1.msra.mxu0 0.0
    %127 = vmatprep.subr.mxu0 0.0
    %128 = vmatpush1.msra.mxu0 0.0
    %129 = vmatprep.subr.mxu0 0.0
    %130 = vmatpush1.msra.mxu0 0.0
    %131 = vmatprep.subr.mxu0 0.0
    %132 = vmatpush1.msra.mxu0 0.0
    %133 = vmatprep.subr.mxu0 0.0
    %134 = vmatpush1.msra.mxu0 0.0
    %135 = vmatprep.subr.mxu0 0.0
    %136 = vmatpush1.msra.mxu0 0.0
    %137 = vmatprep.subr.mxu0 0.0
    %138 = vmatpush1.msra.mxu0 0.0
    %139 = vmatprep.subr.mxu0 0.0
    %140 = vmatpush1.msra.mxu0 0.0
    %141 = vmatprep.subr.mxu0 0.0
    %142 = vmatpush1.msra.mxu0 0.0
    %143 = vmatprep.subr.mxu0 0.0
    %144 = vmatpush1.msra.mxu0 0.0
    %145 = vmatprep.subr.mxu0 0.0
    %146 = vmatpush1.msra.mxu0 0.0
    %147 = vmatprep.subr.mxu0 0.0
    %148 = vmatpush1.msra.mxu0 0.0
    %149 = vmatprep.subr.mxu0 0.0
    %150 = vmatpush1.msra.mxu0 0.0
    %151 = vmatprep.subr.mxu0 0.0
    %152 = vmatpush1.msra.mxu0 0.0
    %153 = vmatprep.mubr.f32.mxu0 0.0
    %154 = vmatmul.mubr.f32.gmra.mrb[0].mxu0 %v87
    %v155 = vpop.f32.mrb[0].mxu0
    %v156 = vadd.f32 0.0, %v155
    %v157 = vpop.f32.mrb[0].mxu0
    %158 = vdwg.mxu0
    %vm159 = vcmask 261120
    %v160 = vsel %vm159, %v156, 0.0
    %v161 = vrot.slane %v160, 4
    %v162 = vadd.f32 %v160, %v161
    %v163 = vrot.slane %v162, 2
    %v164 = vadd.f32 %v162, %v163
    %v165 = vrot.slane %v164, 1
    %v166 = vadd.f32 %v164, %v165
    %v167 = vmul.f32 %v166, 0.125
    %v168 = vmul.f32 %v156, %v156
    %v169 = vsel %vm159, %v168, 0.0
    %v170 = vrot.slane %v169, 4
    %v171 = vadd.f32 %v169, %v170
    %v172 = vrot.slane %v171, 2
    %v173 = vadd.f32 %v171, %v172
    %v174 = vrot.slane %v173, 1
    %v175 = vadd.f32 %v173, %v174
    %v176 = vmul.f32 %v175, 0.125
    %v177 = vmul.f32 %v167, %v167
    %v178 = vsub.f32 %v176, %v177
    %v179 = vmax.f32 %v178, 0.0
    %v180 = vadd.f32 %v179, 1e-05
    %v181 = vrsqrt.pop %v180
    %v182 = vmul.f32 %v181, %v20
    %v183 = vmul.f32 %v167, %v182
    %v185 = vrot.slane %v183, 7
    %v187 = vsub.f32 %v20, %v185
    %v188 = vlaneseq
    %v189 = vshrl.u32 %v188, 7
    %v190 = vsub.s32 0, %v189
    %v191 = vrot.slane %v182, %v190
    %v192 = vmul.f32 %v156, %v191
    %v193 = vlaneseq
    %v194 = vshrl.u32 %v193, 7
    %v195 = vsub.s32 1, %v194
    %v196 = vrot.slane %v187, %v195
    %v197 = vadd.f32 %v192, %v196
    %198 = vst.msk [vmem:[#allocation2] sm:$0xff] %vm159, %v197
    // Predicated region
    $region18: #{tpu_custom_call.1} parent=1 // pred_check
      _
    $region19: #{tpu_custom_call.1} parent=1 // pred_check_branch
      %200 = sbr.rel (0) target = $region21
    $region20: #{tpu_custom_call.1} parent=1 // pred_region
      %s202 = ssub.s32 128, 128
      %203 = vsyncadd [#allocation3], %s202
      %s205 = sshll.u32 [#allocation2], 4
      %s206 = int_to_ptr.vmem [resolvable:$true] %s205
      %208 = dma.vmem_to_hbm [thread:$0]  %s206, 128, %s4, [#allocation3]
    $region21: #{tpu_custom_call.1} parent=1 // pred_fallthru
      _
    // Predicated region
    $region22: #{tpu_custom_call.1} parent=1 // pred_check
      _
    $region23: #{tpu_custom_call.1} parent=1 // pred_check_branch
      %210 = sbr.rel (0) target = $region25
    $region24: #{tpu_custom_call.1} parent=1 // pred_region
      %211 = dma.done [#allocation3], 128
    $region25: #{tpu_custom_call.1} parent=1 // pred_fallthru
      _
    %212 = vsyncpa [#allocation3], 1

</llo_original>
